<compile_context>
chip_gen: v5e
topology: v5e:2x2
jax: 0.10.0
libtpu: 0.0.40
codegen_flags: <defaults>
</compile_context>

<pallas_src>
import functools

import jax
import jax.numpy as jnp
from jax.experimental import pallas as pl
from jax.experimental.pallas import tpu as pltpu


POSE_OFFSET = 1.20919958
NUM_JOINTS = 35

# Batch threshold above which the row-parallel gridded path is used.
_LARGE_B_ROW_BLOCK = 128
_LARGE_B_THRESHOLD = 512


# ---------------------------------------------------------------------------
# Pallas kernel: out = x @ W + b   (pose offsets / pose_var pre-folded into b)
# ---------------------------------------------------------------------------
def _pose_kernel(x_ref, w_ref, b_ref, o_ref):
    o_ref[...] = (
        jnp.dot(x_ref[...], w_ref[...], preferred_element_type=jnp.float32)
        + b_ref[...]
    )


def init_pose_predictor_params(key, nz_feat, num_joints=NUM_JOINTS):
    """Mirror PosePredictor.__init__: Linear(nz_feat, num_joints*3) with
    weight/bias ~ N(0, 1e-4).  Returns the raw (torch-layout) weight/bias plus
    the kernel operands: w_eff (nz_feat, n_out) and the offset-folded bias
    b_eff (1, n_out)."""
    n_out = num_joints * 3
    kw, kb = jax.random.split(key)
    w = jax.random.normal(kw, (n_out, nz_feat), jnp.float32) * 1e-4  # (out, in)
    b = jax.random.normal(kb, (n_out,), jnp.float32) * 1e-4

    pose_var = 1.0  # constant in the module; folded into the effective params
    b_eff = (pose_var * b).at[0].add(POSE_OFFSET) \
                          .at[1].add(POSE_OFFSET) \
                          .at[2].add(-POSE_OFFSET)
    w_eff = (pose_var * w).T                      # (nz_feat, n_out), f32

    return dict(w=w, b=b, w_eff=w_eff, b_eff=b_eff.reshape(1, n_out))


@functools.partial(jax.jit, static_argnames=("num_joints",))
def pose_predictor_forward(w_eff, b_eff, feat, num_joints=NUM_JOINTS):
    """feat: (B, nz_feat) -> pose: (B, num_joints*3).  Single pallas_call,
    no wrapper pads / casts / crops."""
    B, K = feat.shape
    n_out = num_joints * 3
    out_shape = jax.ShapeDtypeStruct((B, n_out), jnp.float32)

    large_b = (B >= _LARGE_B_THRESHOLD) and (B % _LARGE_B_ROW_BLOCK == 0)

    if not large_b:
        # Tiny/medium batch: grid-less, full arrays as single VMEM blocks.
        return pl.pallas_call(
            _pose_kernel,
            out_shape=out_shape,
        )(feat, w_eff, b_eff)

    # Large batch: 1-D row-parallel grid (megacore sharding on v7x, pipelined
    # activation DMA everywhere).  Weight/bias blocks are grid-invariant.
    tm = _LARGE_B_ROW_BLOCK
    return pl.pallas_call(
        _pose_kernel,
        out_shape=out_shape,
        grid=(pl.cdiv(B, tm),),
        in_specs=[
            pl.BlockSpec((tm, K), lambda i: (i, 0)),
            pl.BlockSpec((K, n_out), lambda i: (0, 0)),
            pl.BlockSpec((1, n_out), lambda i: (0, 0)),
        ],
        out_specs=pl.BlockSpec((tm, n_out), lambda i: (i, 0)),
        compiler_params=pltpu.CompilerParams(
            dimension_semantics=("parallel",)),
    )(feat, w_eff, b_eff)


# ---------------------------------------------------------------------------
if __name__ == "__main__":
    key = jax.random.PRNGKey(0)
    k_param, k_feat = jax.random.split(key)

    B, NZ_FEAT = 2, 32
    params = init_pose_predictor_params(k_param, NZ_FEAT, num_joints=NUM_JOINTS)
    feat = jax.random.normal(k_feat, (B, NZ_FEAT), jnp.float32)

    pose = pose_predictor_forward(params["w_eff"], params["b_eff"], feat,
                                  num_joints=NUM_JOINTS)
    pose = jax.block_until_ready(pose)
    assert pose.shape == (B, NUM_JOINTS * 3)

    # plain-JAX reference following the PyTorch forward exactly
    pose_var = 1.0
    ref = pose_var * (feat @ params["w"].T + params["b"])
    ref = ref.at[:, 0].add(POSE_OFFSET)
    ref = ref.at[:, 1].add(POSE_OFFSET)
    ref = ref.at[:, 2].add(-POSE_OFFSET)
    assert jnp.allclose(pose, ref, atol=1e-5), float(jnp.max(jnp.abs(pose - ref)))

    print("KERNEL_OK")
</pallas_src>

<mosaic_0001>
module attributes {stable_mosaic.version = 11 : i64} {
  func.func @_pose_kernel(%arg0: memref<2x32xf32, #tpu.memory_space<vmem>>, %arg1: memref<32x105xf32, #tpu.memory_space<vmem>>, %arg2: memref<1x105xf32, #tpu.memory_space<vmem>>, %arg3: memref<2x105xf32, #tpu.memory_space<vmem>>) attributes {dimension_semantics = [], scalar_prefetch = 0 : i64, scratch_operands = 0 : i64, tpu.core_type = #tpu.core_type<tc>} {
    %c0 = arith.constant 0 : index
    %c0_0 = arith.constant 0 : index
    %0 = vector.load %arg0[%c0, %c0_0] : memref<2x32xf32, #tpu.memory_space<vmem>>, vector<2x32xf32>
    %c0_1 = arith.constant 0 : index
    %c0_2 = arith.constant 0 : index
    %1 = vector.load %arg1[%c0_1, %c0_2] : memref<32x105xf32, #tpu.memory_space<vmem>>, vector<32x105xf32>
    %cst = arith.constant dense<0.000000e+00> : vector<2x105xf32>
    %2 = tpu.matmul %0, %1, %cst {dimension_numbers = #tpu.dot_dimension_numbers<[1], [0], [0], [1], [0, 0, 1, 1], [], []>} : vector<2x32xf32>, vector<32x105xf32>, vector<2x105xf32> -> vector<2x105xf32>
    %c0_3 = arith.constant 0 : index
    %c0_4 = arith.constant 0 : index
    %3 = vector.load %arg2[%c0_3, %c0_4] : memref<1x105xf32, #tpu.memory_space<vmem>>, vector<1x105xf32>
    %4 = vector.broadcast %3 : vector<1x105xf32> to vector<2x105xf32>
    %5 = arith.addf %2, %4 : vector<2x105xf32>
    %c0_5 = arith.constant 0 : index
    %c0_6 = arith.constant 0 : index
    %6 = vector.load %arg3[%c0_5, %c0_6] : memref<2x105xf32, #tpu.memory_space<vmem>>, vector<2x105xf32>
    tpu.vector_store %arg3[%c0_5, %c0_6], %5 {strides = array<i32>} : memref<2x105xf32, #tpu.memory_space<vmem>>, vector<2x105xf32>,
    return
  }
}

</mosaic_0001>

<llo_original>
// kernel: pose_predictor_forward.1
$region0: #{pose_predictor_forward.1}
  #allocation0 [shape = 'u32[]', space=smem, size = 0x4, offset = 0x4, fixed_abs, tag = 'smem constant byte address 0x4 - core index']
  #allocation1 [shape = 'u32[72,128]{1,0:T(1,128)}', space=vmem, size = 0x9000, scoped, tag = 'internal scratch']
  %s0 = inlined_call_operand.hbm [shape: f32[2,32], index: 0, kind: input, shape index: {}]
  %s1 = inlined_call_operand.hbm [shape: f32[32,105], index: 1, kind: input, shape index: {}]
  %s2 = inlined_call_operand.hbm [shape: f32[1,105], index: 2, kind: input, shape index: {}]
  %s3 = inlined_call_operand.hbm [shape: f32[2,105], index: 3, kind: output, shape index: {}]
  %s4 = sld [smem:[#allocation0]]
  $region34: #{pose_predictor_forward.1} parent=0
    _
  %s6 = ssub.s32 1, %s4
  %s7 = scalar_select 0, %s6, %s4
  $region1: #{pose_predictor_forward.1} parent=0
    #allocation2 [shape = 'u8[1024]{0}', space=vmem, size = 0x400, scoped, tag = 'input window, operand 0, single buffered']
    #allocation3 [shape = 's32[1]{0}', space=sflag, size = 0x4, scoped, tag = 'scoped memory for pose_predictor_forward.1']
    #allocation4 [shape = 's32[1]{0}', space=sflag, size = 0x4, scoped, tag = 'scoped memory for pose_predictor_forward.1']
    #allocation5 [shape = 'u8[16384]{0}', space=vmem, size = 0x4000, scoped, tag = 'input window, operand 1, single buffered']
    #allocation6 [shape = 's32[1]{0}', space=sflag, size = 0x4, scoped, tag = 'scoped memory for pose_predictor_forward.1']
    #allocation7 [shape = 'u8[512]{0}', space=vmem, size = 0x400, scoped, tag = 'input window, operand 2, single buffered']
    #allocation8 [shape = 'u8[1024]{0}', space=vmem, size = 0x400, scoped, tag = 'output window, operand 0, single buffered']
    %8 = vsyncpa [#allocation3], 0
    %9 = vsyncpa [#allocation6], 0
    %10 = vsyncpa [#allocation4], 0
    // Predicated region
    $region2: #{pose_predictor_forward.1} parent=1 // pred_check
      _
    $region3: #{pose_predictor_forward.1} parent=1 // pred_check_branch
      %12 = sbr.rel (0) target = $region5
    $region4: #{pose_predictor_forward.1} parent=1 // pred_region
      %14 = vsyncadd [#allocation3], 0
      %s16 = sshll.u32 %s0, 4
      %s17 = int_to_ptr.hbm [resolvable:$true] %s16
      %s18 = sshll.u32 [#allocation2], 4
      %s19 = int_to_ptr.vmem [resolvable:$true] %s18
      %21 = dma.hbm_to_vmem [thread:$0]  %s17, 32, %s19, [#allocation3]
    $region5: #{pose_predictor_forward.1} parent=1 // pred_fallthru
      _
    // Predicated region
    $region6: #{pose_predictor_forward.1} parent=1 // pred_check
      _
    $region7: #{pose_predictor_forward.1} parent=1 // pred_check_branch
      %23 = sbr.rel (0) target = $region9
    $region8: #{pose_predictor_forward.1} parent=1 // pred_region
      %25 = vsyncadd [#allocation6], 0
      %s26 = sshll.u32 %s1, 4
      %s27 = int_to_ptr.hbm [resolvable:$true] %s26
      %s28 = sshll.u32 [#allocation5], 4
      %s29 = int_to_ptr.vmem [resolvable:$true] %s28
      %34 = dma.hbm_to_vmem [thread:$0]  %s27, 512, %s29, [#allocation6], 128, 128, 8
    $region9: #{pose_predictor_forward.1} parent=1 // pred_fallthru
      _
    // Predicated region
    $region10: #{pose_predictor_forward.1} parent=1 // pred_check
      _
    $region11: #{pose_predictor_forward.1} parent=1 // pred_check_branch
      %36 = sbr.rel (0) target = $region13
    $region12: #{pose_predictor_forward.1} parent=1 // pred_region
      %38 = vsyncadd [#allocation6], 0
      %s40 = sshll.u32 %s2, 4
      %s41 = int_to_ptr.hbm [resolvable:$true] %s40
      %s42 = sshll.u32 [#allocation7], 4
      %s43 = int_to_ptr.vmem [resolvable:$true] %s42
      %45 = dma.hbm_to_vmem [thread:$0]  %s41, 16, %s43, [#allocation6]
    $region13: #{pose_predictor_forward.1} parent=1 // pred_fallthru
      _
    // Predicated region
    $region14: #{pose_predictor_forward.1} parent=1 // pred_check
      _
    $region15: #{pose_predictor_forward.1} parent=1 // pred_check_branch
      %47 = sbr.rel (0) target = $region17
    $region16: #{pose_predictor_forward.1} parent=1 // pred_region
      %49 = dma.done [#allocation3], 32
    $region17: #{pose_predictor_forward.1} parent=1 // pred_fallthru
      _
    // Predicated region
    $region18: #{pose_predictor_forward.1} parent=1 // pred_check
      _
    $region19: #{pose_predictor_forward.1} parent=1 // pred_check_branch
      %51 = sbr.rel (0) target = $region21
    $region20: #{pose_predictor_forward.1} parent=1 // pred_region
      %53 = dma.done [#allocation6], 512
    $region21: #{pose_predictor_forward.1} parent=1 // pred_fallthru
      _
    // Predicated region
    $region22: #{pose_predictor_forward.1} parent=1 // pred_check
      _
    $region23: #{pose_predictor_forward.1} parent=1 // pred_check_branch
      %55 = sbr.rel (0) target = $region25
    $region24: #{pose_predictor_forward.1} parent=1 // pred_region
      %57 = dma.done [#allocation6], 16
    $region25: #{pose_predictor_forward.1} parent=1 // pred_fallthru
      _
    %v58 = vld [vmem:[#allocation2] sm:$0x3]
    %v59 = vld [vmem:[#allocation5] sm:$0xff]
    %v60 = vld [vmem:[#allocation5 + $0x8] sm:$0xff]
    %v61 = vld [vmem:[#allocation5 + $0x10] sm:$0xff]
    %v62 = vld [vmem:[#allocation5 + $0x18] sm:$0xff]
    %v63 = vld [vmem:[#allocation7] sm:$0x1]
    %v65 = vperm.slane %v63, 0
    %vm67 = vcmask 261120
    %v69 = vsel %vm67, %v58, 0
    %71 = vmatpush.msra.mxu0 0.0
    %72 = vmatpush.msra.mxu0 0.0
    %73 = vmatpush.msra.mxu0 0.0
    %74 = vmatpush.msra.mxu0 0.0
    %75 = vmatpush.msra.mxu0 0.0
    %76 = vmatpush.msra.mxu0 0.0
    %77 = vmatpush.msra.mxu0 0.0
    %78 = vmatpush.msra.mxu0 0.0
    %79 = vmatpush.msra.mxu0 0.0
    %80 = vmatpush.msra.mxu0 0.0
    %81 = vmatpush.msra.mxu0 0.0
    %82 = vmatpush.msra.mxu0 0.0
    %83 = vmatpush.msra.mxu0 %v62
    %84 = vmatpush.msra.mxu0 %v61
    %85 = vmatpush.msra.mxu0 %v60
    %86 = vmatpush.msra.mxu0 %v59
    %87 = vmatmul.f32.gmra.mxu0 %v69
    %v88 = vpop.f32.mrf.mxu0
    %v89 = vadd.f32 %v65, %v88
    %90 = vdwg.mxu0
    %vm91 = vcmask 852992
    %92 = vst.msk [vmem:[#allocation8] sm:$0x3] %vm91, %v89
    // Predicated region
    $region26: #{pose_predictor_forward.1} parent=1 // pred_check
      _
    $region27: #{pose_predictor_forward.1} parent=1 // pred_check_branch
      %94 = sbr.rel (0) target = $region29
    $region28: #{pose_predictor_forward.1} parent=1 // pred_region
      %96 = vsyncadd [#allocation4], 0
      %s98 = sshll.u32 [#allocation8], 4
      %s99 = int_to_ptr.vmem [resolvable:$true] %s98
      %s100 = sshll.u32 %s3, 4
      %s101 = int_to_ptr.hbm [resolvable:$true] %s100
      %103 = dma.vmem_to_hbm [thread:$0]  %s99, 32, %s101, [#allocation4]
    $region29: #{pose_predictor_forward.1} parent=1 // pred_fallthru
      _
    // Predicated region
    $region30: #{pose_predictor_forward.1} parent=1 // pred_check
      _
    $region31: #{pose_predictor_forward.1} parent=1 // pred_check_branch
      %105 = sbr.rel (0) target = $region33
    $region32: #{pose_predictor_forward.1} parent=1 // pred_region
      %107 = dma.done [#allocation4], 32
    $region33: #{pose_predictor_forward.1} parent=1 // pred_fallthru
      _
    %108 = vsyncpa [#allocation3], 1
    %109 = vsyncpa [#allocation6], 1
    %110 = vsyncpa [#allocation4], 1

</llo_original>
